<compile_context>
chip_gen: v7x
topology: tpu7x:2x2x1
jax: 0.10.0
libtpu: 0.0.40
codegen_flags: <defaults>
</compile_context>

<pallas_src>
import jax
import jax.numpy as jnp
from jax import lax
from jax.experimental import pallas as pl
from jax.experimental.pallas import tpu as pltpu


def _round_up(x: int, m: int) -> int:
    return ((x + m - 1) // m) * m


def _vehicle_selection_decoder_kernel(v_ref, r_ref, w1_ref, w2_ref, b_ref, o_ref):
    # v_ref:  (TN, D1)   r_ref:  (TN, D2)
    # w1_ref: (1, D1)    w2_ref: (1, D2)    b_ref: (1, 1) in SMEM
    # o_ref:  (1, TN)    -- lane-dense logits row for this tile.
    #
    # logits^T = w1 @ v^T + w2 @ r^T  (contract the feature dim of both
    # operands; MXU handles the trans_b form, no in-kernel transpose/concat).
    acc = lax.dot_general(
        w1_ref[...], v_ref[...],
        dimension_numbers=(((1,), (1,)), ((), ())),
        preferred_element_type=jnp.float32)
    acc = acc + lax.dot_general(
        w2_ref[...], r_ref[...],
        dimension_numbers=(((1,), (1,)), ((), ())),
        preferred_element_type=jnp.float32)
    o_ref[...] = (acc + b_ref[0, 0]).astype(o_ref.dtype)


def vehicle_selection_decoder(vehicles_state_embedding, routes_embedding,
                              weight, bias, *, tile_rows=1024):
    """Forward pass of VehicleSelectionDecoder.

    Args:
      vehicles_state_embedding: [N, D1] (f32 or bf16)
      routes_embedding:         [N, D2] (f32 or bf16)
      weight:                   [1, D1+D2] (PyTorch Linear weight layout)
      bias:                     [1]
    Returns:
      logits: [N] in the embeddings' dtype (f32 accumulation inside).
    """
    n, d1 = vehicles_state_embedding.shape
    n2, d2 = routes_embedding.shape
    assert n == n2
    assert weight.shape == (1, d1 + d2)

    in_dtype = vehicles_state_embedding.dtype
    out_dtype = in_dtype
    itemsize = jnp.dtype(in_dtype).itemsize
    # Sublane granularity: 8 for 4-byte, 16 for 2-byte dtypes.
    sublane = max(8, 32 // max(itemsize, 1))

    # Tile size over N. Single tile for small N; otherwise a multiple of 128 so
    # the lane-dense (1, TN) output block is legal and stores are unmasked.
    if n <= tile_rows:
        tn = _round_up(n, sublane)
    else:
        tn = _round_up(tile_rows, 128)
    n_pad = _round_up(n, tn)

    v = vehicles_state_embedding
    r = routes_embedding
    if n_pad != n:
        v = jnp.pad(v, ((0, n_pad - n), (0, 0)))
        r = jnp.pad(r, ((0, n_pad - n), (0, 0)))

    # Split the weight (no concat in the kernel); match the embedding dtype so
    # the MXU sees homogeneous operands, accumulate in f32.
    w1 = weight[:, :d1].astype(in_dtype)          # (1, D1)
    w2 = weight[:, d1:].astype(in_dtype)          # (1, D2)
    b_smem = bias.reshape(1, 1).astype(jnp.float32)

    # Advisory cost: this op is HBM-bandwidth bound (~0.5 flop/byte).
    bytes_accessed = (n_pad * (d1 + d2) * itemsize
                      + (d1 + d2) * jnp.dtype(weight.dtype).itemsize
                      + n_pad * jnp.dtype(out_dtype).itemsize)
    cost = pl.CostEstimate(flops=2 * n_pad * (d1 + d2),
                           transcendentals=0,
                           bytes_accessed=bytes_accessed)

    grid = (n_pad // tn,)
    out = pl.pallas_call(
        _vehicle_selection_decoder_kernel,
        out_shape=jax.ShapeDtypeStruct((1, n_pad), out_dtype),
        grid_spec=pltpu.PrefetchScalarGridSpec(
            num_scalar_prefetch=0,
            grid=grid,
            in_specs=[
                pl.BlockSpec((tn, d1), lambda i: (i, 0)),
                pl.BlockSpec((tn, d2), lambda i: (i, 0)),
                pl.BlockSpec((1, d1), lambda i: (0, 0)),
                pl.BlockSpec((1, d2), lambda i: (0, 0)),
                pl.BlockSpec(memory_space=pltpu.SMEM),
            ],
            out_specs=pl.BlockSpec((1, tn), lambda i: (0, i)),
        ),
        compiler_params=pltpu.CompilerParams(
            dimension_semantics=("parallel",)),
        cost_estimate=cost,
    )(v, r, w1, w2, b_smem)

    return out[0, :n]


def _reference(vehicles_state_embedding, routes_embedding, weight, bias):
    x = jnp.concatenate([vehicles_state_embedding, routes_embedding], axis=1)
    return (x @ weight.T + bias)[:, 0]


if __name__ == "__main__":
    key = jax.random.PRNGKey(0)
    k1, k2, k3, k4 = jax.random.split(key, 4)

    N = 8                       # number of vehicles (batch)
    D1 = 32                     # vehicles_state_embedding_dim
    D2 = 32                     # routes_embedding_dim

    vehicles_state_embedding = jax.random.normal(k1, (N, D1), dtype=jnp.float32)
    routes_embedding = jax.random.normal(k2, (N, D2), dtype=jnp.float32)

    # Deterministic Linear(D1+D2, 1) params (PyTorch-style uniform init bound).
    bound = 1.0 / jnp.sqrt(jnp.float32(D1 + D2))
    weight = jax.random.uniform(k3, (1, D1 + D2), minval=-bound, maxval=bound,
                                dtype=jnp.float32)
    bias = jax.random.uniform(k4, (1,), minval=-bound, maxval=bound,
                              dtype=jnp.float32)

    # Case 1: small single-tile path.
    logits = vehicle_selection_decoder(vehicles_state_embedding, routes_embedding,
                                       weight, bias)
    jax.block_until_ready(logits)
    ref = _reference(vehicles_state_embedding, routes_embedding, weight, bias)
    assert logits.shape == (N,)
    assert jnp.allclose(logits, ref, atol=1e-5, rtol=1e-5), (logits, ref)

    # Case 2: multi-tile path with a ragged tail (exercises tiling + padding).
    N2 = 300
    k5, k6 = jax.random.split(k1)
    v2 = jax.random.normal(k5, (N2, D1), dtype=jnp.float32)
    r2 = jax.random.normal(k6, (N2, D2), dtype=jnp.float32)
    logits2 = vehicle_selection_decoder(v2, r2, weight, bias, tile_rows=128)
    jax.block_until_ready(logits2)
    ref2 = _reference(v2, r2, weight, bias)
    assert logits2.shape == (N2,)
    assert jnp.allclose(logits2, ref2, atol=1e-5, rtol=1e-5)

    print("KERNEL_OK")
</pallas_src>

<mosaic_0001>
module attributes {stable_mosaic.version = 11 : i64} {
  func.func @_vehicle_selection_decoder_kernel(%arg0: i32, %arg1: memref<8x32xf32, #tpu.memory_space<vmem>>, %arg2: memref<8x32xf32, #tpu.memory_space<vmem>>, %arg3: memref<1x32xf32, #tpu.memory_space<vmem>>, %arg4: memref<1x32xf32, #tpu.memory_space<vmem>>, %arg5: memref<1x1xf32, #tpu.memory_space<smem>>, %arg6: memref<1x8xf32, #tpu.memory_space<vmem>>) attributes {dimension_semantics = [#tpu.dimension_semantics<parallel>], iteration_bounds = array<i64: 1>, scalar_prefetch = 0 : i64, scratch_operands = 0 : i64, tpu.core_type = #tpu.core_type<tc>, window_params = [{transform_indices = @transform_0, window_bounds = array<i64: 8, 32>}, {transform_indices = @transform_1, window_bounds = array<i64: 8, 32>}, {pipeline_mode = #tpu.pipeline_mode<synchronous>, transform_indices = @transform_2, window_bounds = array<i64: 1, 32>}, {pipeline_mode = #tpu.pipeline_mode<synchronous>, transform_indices = @transform_3, window_bounds = array<i64: 1, 32>}, {transform_indices = @transform_4, window_bounds = array<i64: 1, 1>}, {transform_indices = @transform_5, window_bounds = array<i64: 1, 8>}]} {
    %c0 = arith.constant 0 : index
    %c0_0 = arith.constant 0 : index
    %0 = vector.load %arg3[%c0, %c0_0] : memref<1x32xf32, #tpu.memory_space<vmem>>, vector<1x32xf32>
    %c0_1 = arith.constant 0 : index
    %c0_2 = arith.constant 0 : index
    %1 = vector.load %arg1[%c0_1, %c0_2] : memref<8x32xf32, #tpu.memory_space<vmem>>, vector<8x32xf32>
    %cst = arith.constant dense<0.000000e+00> : vector<1x8xf32>
    %2 = tpu.matmul %0, %1, %cst {dimension_numbers = #tpu.dot_dimension_numbers<[1], [1], [0], [0], [0, 0, 1, 0], [], []>} : vector<1x32xf32>, vector<8x32xf32>, vector<1x8xf32> -> vector<1x8xf32>
    %c0_3 = arith.constant 0 : index
    %c0_4 = arith.constant 0 : index
    %3 = vector.load %arg4[%c0_3, %c0_4] : memref<1x32xf32, #tpu.memory_space<vmem>>, vector<1x32xf32>
    %c0_5 = arith.constant 0 : index
    %c0_6 = arith.constant 0 : index
    %4 = vector.load %arg2[%c0_5, %c0_6] : memref<8x32xf32, #tpu.memory_space<vmem>>, vector<8x32xf32>
    %cst_7 = arith.constant dense<0.000000e+00> : vector<1x8xf32>
    %5 = tpu.matmul %3, %4, %cst_7 {dimension_numbers = #tpu.dot_dimension_numbers<[1], [1], [0], [0], [0, 0, 1, 0], [], []>} : vector<1x32xf32>, vector<8x32xf32>, vector<1x8xf32> -> vector<1x8xf32>
    %6 = arith.addf %2, %5 : vector<1x8xf32>
    %c0_8 = arith.constant 0 : index
    %c0_9 = arith.constant 0 : index
    %7 = memref.load %arg5[%c0_8, %c0_9] : memref<1x1xf32, #tpu.memory_space<smem>>
    %8 = vector.broadcast %7 : f32 to vector<1x8xf32>
    %9 = arith.addf %6, %8 : vector<1x8xf32>
    %c0_10 = arith.constant 0 : index
    %c0_11 = arith.constant 0 : index
    %10 = vector.load %arg6[%c0_10, %c0_11] : memref<1x8xf32, #tpu.memory_space<vmem>>, vector<1x8xf32>
    tpu.vector_store %arg6[%c0_10, %c0_11], %9 {strides = array<i32>} : memref<1x8xf32, #tpu.memory_space<vmem>>, vector<1x8xf32>,
    return
  }
  func.func @transform_0(%arg0: i32) -> (i32, i32) {
    %c0_i32 = arith.constant 0 : i32
    %c0_i32_0 = arith.constant 0 : i32
    return %arg0, %c0_i32 : i32, i32
  }
  func.func @transform_1(%arg0: i32) -> (i32, i32) {
    %c0_i32 = arith.constant 0 : i32
    %c0_i32_0 = arith.constant 0 : i32
    return %arg0, %c0_i32 : i32, i32
  }
  func.func @transform_2(%arg0: i32) -> (i32, i32) {
    %c0_i32 = arith.constant 0 : i32
    %c0_i32_0 = arith.constant 0 : i32
    %c0_i32_1 = arith.constant 0 : i32
    return %c0_i32, %c0_i32_0 : i32, i32
  }
  func.func @transform_3(%arg0: i32) -> (i32, i32) {
    %c0_i32 = arith.constant 0 : i32
    %c0_i32_0 = arith.constant 0 : i32
    %c0_i32_1 = arith.constant 0 : i32
    return %c0_i32, %c0_i32_0 : i32, i32
  }
  func.func @transform_4(%arg0: i32) -> (i32, i32) {
    %c0_i32 = arith.constant 0 : i32
    %c0_i32_0 = arith.constant 0 : i32
    %c0_i32_1 = arith.constant 0 : i32
    return %c0_i32, %c0_i32_0 : i32, i32
  }
  func.func @transform_5(%arg0: i32) -> (i32, i32) {
    %c0_i32 = arith.constant 0 : i32
    %c0_i32_0 = arith.constant 0 : i32
    return %c0_i32, %arg0 : i32, i32
  }
}

</mosaic_0001>

<llo_original>
// kernel: tpu_custom_call.1
$region0: #{tpu_custom_call.1}
  #allocation0 [shape = 'u32[]', space=smem, size = 0x4, offset = 0x4, fixed_abs, tag = 'smem constant byte address 0x4 - core index']
  #allocation1 [shape = 'u32[144,128]{1,0:T(1,128)}', space=vmem, size = 0x12000, scoped, tag = 'internal scratch']
  #allocation2 [shape = 'f32[1,1]{1,0:T(1,128)S(6)}', space=smem, size = 0x200, scoped, tag = 'scoped memory for tpu_custom_call.1']
  %s0 = inlined_call_operand.hbm [shape: f32[8,32], index: 0, kind: input, shape index: {}]
  %s1 = inlined_call_operand.hbm [shape: f32[8,32], index: 1, kind: input, shape index: {}]
  %s2 = inlined_call_operand.vmem [shape: f32[1,32], index: 2, kind: input, shape index: {}]
  %s3 = inlined_call_operand.vmem [shape: f32[1,32], index: 3, kind: input, shape index: {}]
  %s4 = inlined_call_operand.<no memory space> [shape: f32[1,1], index: 4, kind: input, shape index: {}]
  %s5 = inlined_call_operand.hbm [shape: f32[1,8], index: 5, kind: output, shape index: {}]
  %s6 = sld [smem:[#allocation0]]
  $region38: #{tpu_custom_call.1} parent=0
    _
  %s8 = ssub.s32 1, %s6
  %s9 = scalar_select 0, %s8, %s6
  %10 = sst [smem:[#allocation2]] %s4
  $region1: #{tpu_custom_call.1} parent=0
    #allocation3 [shape = 'u8[4096]{0}', space=vmem, size = 0x1000, scoped, tag = 'input window, operand 0, single buffered']
    #allocation4 [shape = 's32[1]{0}', space=sflag, size = 0x4, scoped, tag = 'scoped memory for tpu_custom_call.1']
    #allocation5 [shape = 's32[1]{0}', space=sflag, size = 0x4, scoped, tag = 'scoped memory for tpu_custom_call.1']
    #allocation6 [shape = 'u8[4096]{0}', space=vmem, size = 0x1000, scoped, tag = 'input window, operand 1, single buffered']
    #allocation7 [shape = 's32[1]{0}', space=sflag, size = 0x4, scoped, tag = 'scoped memory for tpu_custom_call.1']
    #allocation8 [shape = 'u8[512]{0}', space=vmem, size = 0x400, scoped, tag = 'output window, operand 0, single buffered']
    %11 = vsyncpa [#allocation4], 0
    %12 = vsyncpa [#allocation7], 0
    %13 = vsyncpa [#allocation5], 0
    // Predicated region
    $region2: #{tpu_custom_call.1} parent=1 // pred_check
      _
    $region3: #{tpu_custom_call.1} parent=1 // pred_check_branch
      %15 = sbr.rel (0) target = $region5
    $region4: #{tpu_custom_call.1} parent=1 // pred_region
      %s17 = ssub.s32 128, 128
      %18 = vsyncadd [#allocation4], %s17
      %s20 = sshll.u32 [#allocation3], 4
      %s21 = int_to_ptr.vmem [resolvable:$true] %s20
      %23 = dma.hbm_to_vmem [thread:$0]  %s0, 128, %s21, [#allocation4]
    $region5: #{tpu_custom_call.1} parent=1 // pred_fallthru
      _
    // Predicated region
    $region6: #{tpu_custom_call.1} parent=1 // pred_check
      _
    $region7: #{tpu_custom_call.1} parent=1 // pred_check_branch
      %25 = sbr.rel (0) target = $region9
    $region8: #{tpu_custom_call.1} parent=1 // pred_region
      %s27 = ssub.s32 128, 128
      %28 = vsyncadd [#allocation7], %s27
      %s30 = sshll.u32 [#allocation6], 4
      %s31 = int_to_ptr.vmem [resolvable:$true] %s30
      %33 = dma.hbm_to_vmem [thread:$0]  %s1, 128, %s31, [#allocation7]
    $region9: #{tpu_custom_call.1} parent=1 // pred_fallthru
      _
    // Predicated region
    $region10: #{tpu_custom_call.1} parent=1 // pred_check
      _
    $region11: #{tpu_custom_call.1} parent=1 // pred_check_branch
      %35 = sbr.rel (0) target = $region13
    $region12: #{tpu_custom_call.1} parent=1 // pred_region
      _
    $region13: #{tpu_custom_call.1} parent=1 // pred_fallthru
      _
    // Predicated region
    $region14: #{tpu_custom_call.1} parent=1 // pred_check
      _
    $region15: #{tpu_custom_call.1} parent=1 // pred_check_branch
      %37 = sbr.rel (0) target = $region17
    $region16: #{tpu_custom_call.1} parent=1 // pred_region
      _
    $region17: #{tpu_custom_call.1} parent=1 // pred_fallthru
      _
    // Predicated region
    $region18: #{tpu_custom_call.1} parent=1 // pred_check
      _
    $region19: #{tpu_custom_call.1} parent=1 // pred_check_branch
      %39 = sbr.rel (0) target = $region21
    $region20: #{tpu_custom_call.1} parent=1 // pred_region
      _
    $region21: #{tpu_custom_call.1} parent=1 // pred_fallthru
      _
    // Predicated region
    $region22: #{tpu_custom_call.1} parent=1 // pred_check
      _
    $region23: #{tpu_custom_call.1} parent=1 // pred_check_branch
      %41 = sbr.rel (0) target = $region25
    $region24: #{tpu_custom_call.1} parent=1 // pred_region
      %42 = dma.done [#allocation4], 128
    $region25: #{tpu_custom_call.1} parent=1 // pred_fallthru
      _
    // Predicated region
    $region26: #{tpu_custom_call.1} parent=1 // pred_check
      _
    $region27: #{tpu_custom_call.1} parent=1 // pred_check_branch
      %44 = sbr.rel (0) target = $region29
    $region28: #{tpu_custom_call.1} parent=1 // pred_region
      %45 = dma.done [#allocation7], 128
    $region29: #{tpu_custom_call.1} parent=1 // pred_fallthru
      _
    %v46 = vld [vmem:[%s2] sm:$0x1]
    %v47 = vld [vmem:[#allocation3] sm:$0xff]
    %v48 = vld [vmem:[%s3] sm:$0x1]
    %v49 = vld [vmem:[#allocation6] sm:$0xff]
    %vm50 = vcmask 261120
    %v52 = vsel %vm50, %v48, 0
    %v55 = vsel %vm50, %v49, 0
    %57 = vmatprep.subr.mxu0 0.0
    %58 = vmatpush1.xpose.msra.mxu0 %v55
    %59 = vmatprep.subr.mxu0 0.0
    %60 = vmatpush1.xpose.msra.mxu0 0.0
    %61 = vmatprep.subr.mxu0 0.0
    %62 = vmatpush1.xpose.msra.mxu0 0.0
    %63 = vmatprep.subr.mxu0 0.0
    %64 = vmatpush1.xpose.msra.mxu0 0.0
    %65 = vmatprep.subr.mxu0 0.0
    %66 = vmatpush1.xpose.msra.mxu0 0.0
    %67 = vmatprep.subr.mxu0 0.0
    %68 = vmatpush1.xpose.msra.mxu0 0.0
    %69 = vmatprep.subr.mxu0 0.0
    %70 = vmatpush1.xpose.msra.mxu0 0.0
    %71 = vmatprep.subr.mxu0 0.0
    %72 = vmatpush1.xpose.msra.mxu0 0.0
    %73 = vmatprep.subr.mxu0 0.0
    %74 = vmatpush1.xpose.msra.mxu0 0.0
    %75 = vmatprep.subr.mxu0 0.0
    %76 = vmatpush1.xpose.msra.mxu0 0.0
    %77 = vmatprep.subr.mxu0 0.0
    %78 = vmatpush1.xpose.msra.mxu0 0.0
    %79 = vmatprep.subr.mxu0 0.0
    %80 = vmatpush1.xpose.msra.mxu0 0.0
    %81 = vmatprep.subr.mxu0 0.0
    %82 = vmatpush1.xpose.msra.mxu0 0.0
    %83 = vmatprep.subr.mxu0 0.0
    %84 = vmatpush1.xpose.msra.mxu0 0.0
    %85 = vmatprep.subr.mxu0 0.0
    %86 = vmatpush1.xpose.msra.mxu0 0.0
    %87 = vmatprep.subr.mxu0 0.0
    %88 = vmatpush1.xpose.msra.mxu0 0.0
    %89 = vmatprep.subr.mxu0 0.0
    %90 = vmatpush1.xpose.msra.mxu0 0.0
    %91 = vmatprep.subr.mxu0 0.0
    %92 = vmatpush1.xpose.msra.mxu0 0.0
    %93 = vmatprep.subr.mxu0 0.0
    %94 = vmatpush1.xpose.msra.mxu0 0.0
    %95 = vmatprep.subr.mxu0 0.0
    %96 = vmatpush1.xpose.msra.mxu0 0.0
    %97 = vmatprep.subr.mxu0 0.0
    %98 = vmatpush1.xpose.msra.mxu0 0.0
    %99 = vmatprep.subr.mxu0 0.0
    %100 = vmatpush1.xpose.msra.mxu0 0.0
    %101 = vmatprep.subr.mxu0 0.0
    %102 = vmatpush1.xpose.msra.mxu0 0.0
    %103 = vmatprep.subr.mxu0 0.0
    %104 = vmatpush1.xpose.msra.mxu0 0.0
    %105 = vmatprep.subr.mxu0 0.0
    %106 = vmatpush1.xpose.msra.mxu0 0.0
    %107 = vmatprep.subr.mxu0 0.0
    %108 = vmatpush1.xpose.msra.mxu0 0.0
    %109 = vmatprep.subr.mxu0 0.0
    %110 = vmatpush1.xpose.msra.mxu0 0.0
    %111 = vmatprep.subr.mxu0 0.0
    %112 = vmatpush1.xpose.msra.mxu0 0.0
    %113 = vmatprep.subr.mxu0 0.0
    %114 = vmatpush1.xpose.msra.mxu0 0.0
    %115 = vmatprep.subr.mxu0 0.0
    %116 = vmatpush1.xpose.msra.mxu0 0.0
    %117 = vmatprep.subr.mxu0 0.0
    %118 = vmatpush1.xpose.msra.mxu0 0.0
    %119 = vmatprep.subr.mxu0 0.0
    %120 = vmatpush1.xpose.msra.mxu0 0.0
    %121 = vmatprep.mubr.f32.mxu0 0.0
    %122 = vmatmul.mubr.f32.gmra.mrb[0].mxu0 %v52
    %v123 = vpop.f32.mrb[0].mxu0
    %v124 = vadd.f32 0.0, %v123
    %v125 = vpop.f32.mrb[0].mxu0
    %126 = vdwg.mxu0
    %v128 = vsel %vm50, %v46, 0
    %v131 = vsel %vm50, %v47, 0
    %133 = vmatprep.subr.mxu0 0.0
    %134 = vmatpush1.xpose.msra.mxu0 %v131
    %135 = vmatprep.subr.mxu0 0.0
    %136 = vmatpush1.xpose.msra.mxu0 0.0
    %137 = vmatprep.subr.mxu0 0.0
    %138 = vmatpush1.xpose.msra.mxu0 0.0
    %139 = vmatprep.subr.mxu0 0.0
    %140 = vmatpush1.xpose.msra.mxu0 0.0
    %141 = vmatprep.subr.mxu0 0.0
    %142 = vmatpush1.xpose.msra.mxu0 0.0
    %143 = vmatprep.subr.mxu0 0.0
    %144 = vmatpush1.xpose.msra.mxu0 0.0
    %145 = vmatprep.subr.mxu0 0.0
    %146 = vmatpush1.xpose.msra.mxu0 0.0
    %147 = vmatprep.subr.mxu0 0.0
    %148 = vmatpush1.xpose.msra.mxu0 0.0
    %149 = vmatprep.subr.mxu0 0.0
    %150 = vmatpush1.xpose.msra.mxu0 0.0
    %151 = vmatprep.subr.mxu0 0.0
    %152 = vmatpush1.xpose.msra.mxu0 0.0
    %153 = vmatprep.subr.mxu0 0.0
    %154 = vmatpush1.xpose.msra.mxu0 0.0
    %155 = vmatprep.subr.mxu0 0.0
    %156 = vmatpush1.xpose.msra.mxu0 0.0
    %157 = vmatprep.subr.mxu0 0.0
    %158 = vmatpush1.xpose.msra.mxu0 0.0
    %159 = vmatprep.subr.mxu0 0.0
    %160 = vmatpush1.xpose.msra.mxu0 0.0
    %161 = vmatprep.subr.mxu0 0.0
    %162 = vmatpush1.xpose.msra.mxu0 0.0
    %163 = vmatprep.subr.mxu0 0.0
    %164 = vmatpush1.xpose.msra.mxu0 0.0
    %165 = vmatprep.subr.mxu0 0.0
    %166 = vmatpush1.xpose.msra.mxu0 0.0
    %167 = vmatprep.subr.mxu0 0.0
    %168 = vmatpush1.xpose.msra.mxu0 0.0
    %169 = vmatprep.subr.mxu0 0.0
    %170 = vmatpush1.xpose.msra.mxu0 0.0
    %171 = vmatprep.subr.mxu0 0.0
    %172 = vmatpush1.xpose.msra.mxu0 0.0
    %173 = vmatprep.subr.mxu0 0.0
    %174 = vmatpush1.xpose.msra.mxu0 0.0
    %175 = vmatprep.subr.mxu0 0.0
    %176 = vmatpush1.xpose.msra.mxu0 0.0
    %177 = vmatprep.subr.mxu0 0.0
    %178 = vmatpush1.xpose.msra.mxu0 0.0
    %179 = vmatprep.subr.mxu0 0.0
    %180 = vmatpush1.xpose.msra.mxu0 0.0
    %181 = vmatprep.subr.mxu0 0.0
    %182 = vmatpush1.xpose.msra.mxu0 0.0
    %183 = vmatprep.subr.mxu0 0.0
    %184 = vmatpush1.xpose.msra.mxu0 0.0
    %185 = vmatprep.subr.mxu0 0.0
    %186 = vmatpush1.xpose.msra.mxu0 0.0
    %187 = vmatprep.subr.mxu0 0.0
    %188 = vmatpush1.xpose.msra.mxu0 0.0
    %189 = vmatprep.subr.mxu0 0.0
    %190 = vmatpush1.xpose.msra.mxu0 0.0
    %191 = vmatprep.subr.mxu0 0.0
    %192 = vmatpush1.xpose.msra.mxu0 0.0
    %193 = vmatprep.subr.mxu0 0.0
    %194 = vmatpush1.xpose.msra.mxu0 0.0
    %195 = vmatprep.subr.mxu0 0.0
    %196 = vmatpush1.xpose.msra.mxu0 0.0
    %197 = vmatprep.mubr.f32.mxu0 0.0
    %198 = vmatmul.mubr.f32.gmra.mrb[0].mxu0 %v128
    %v199 = vpop.f32.mrb[0].mxu0
    %v200 = vadd.f32 %v124, %v199
    %v201 = vpop.f32.mrb[0].mxu0
    %202 = vdwg.mxu0
    %s203 = sld [smem:[#allocation2]]
    %v204 = vstv %s203
    %v205 = vadd.f32 %v200, %v204
    %vm206 = vcmask 57344
    %207 = vst.msk [vmem:[#allocation8] sm:$0x1] %vm206, %v205
    // Predicated region
    $region30: #{tpu_custom_call.1} parent=1 // pred_check
      _
    $region31: #{tpu_custom_call.1} parent=1 // pred_check_branch
      %209 = sbr.rel (0) target = $region33
    $region32: #{tpu_custom_call.1} parent=1 // pred_region
      %s211 = ssub.s32 16, 16
      %212 = vsyncadd [#allocation5], %s211
      %s214 = sshll.u32 [#allocation8], 4
      %s215 = int_to_ptr.vmem [resolvable:$true] %s214
      %217 = dma.vmem_to_hbm [thread:$0]  %s215, 16, %s5, [#allocation5]
    $region33: #{tpu_custom_call.1} parent=1 // pred_fallthru
      _
    // Predicated region
    $region34: #{tpu_custom_call.1} parent=1 // pred_check
      _
    $region35: #{tpu_custom_call.1} parent=1 // pred_check_branch
      %219 = sbr.rel (0) target = $region37
    $region36: #{tpu_custom_call.1} parent=1 // pred_region
      %220 = dma.done [#allocation5], 16
    $region37: #{tpu_custom_call.1} parent=1 // pred_fallthru
      _
    %221 = vsyncpa [#allocation4], 1
    %222 = vsyncpa [#allocation7], 1
    %223 = vsyncpa [#allocation5], 1

</llo_original>
